<compile_context>
chip_gen: v5e
topology: v5e:2x2
jax: 0.10.0
libtpu: 0.0.40
codegen_flags: <defaults>
</compile_context>

<pallas_src>
import jax
import jax.numpy as jnp
from jax.experimental import pallas as pl
from jax.experimental.pallas import tpu as pltpu


def _swish_kernel(x_ref, o_ref):
    x = x_ref[...]
    xf = x.astype(jnp.float32)
    # exp and reciprocal both land on the EUP slot; the mul stays on the VPU.
    sig = pl.reciprocal(1.0 + jnp.exp(-xf), approx=False)
    o_ref[...] = (xf * sig).astype(o_ref.dtype)


def swish(x: jax.Array, *, target_block_bytes: int = 2 * 1024 * 1024) -> jax.Array:
    """Elementwise swish (x * sigmoid(x)) for any float array."""
    orig_shape = x.shape
    dtype = x.dtype
    n = x.size
    if n == 0:
        return x

    itemsize = jnp.dtype(dtype).itemsize

    # --- choose a wide lane dimension that divides the flat size (no padding) ---
    lane = None
    for w in (4096, 2048, 1024, 512, 256, 128):
        if n % w == 0:
            lane = w
            break

    x_flat = jnp.ravel(x)  # free on contiguous input
    if lane is None:
        # Awkward size fallback: minimal pad up to a multiple of 128 lanes.
        lane = 128
        n_pad = pl.cdiv(n, lane) * lane
        x_flat = jnp.pad(x_flat, (0, n_pad - n))
        rows = n_pad // lane
        padded = True
    else:
        rows = n // lane
        padded = False

    x2d = x_flat.reshape(rows, lane)

    # --- pick tile_rows: ~target_block_bytes per input block, sublane-aligned ---
    bytes_per_row = lane * itemsize
    tile_rows = max(8, target_block_bytes // bytes_per_row)
    tile_rows = (tile_rows // 8) * 8
    if tile_rows >= rows:
        tile_rows = rows  # block equals full row extent -> always legal

    grid = (pl.cdiv(rows, tile_rows),)  # masked last block handles remainders

    cost = pl.CostEstimate(
        flops=5 * n,
        transcendentals=n,
        bytes_accessed=2 * n * itemsize,
    )

    out2d = pl.pallas_call(
        _swish_kernel,
        out_shape=jax.ShapeDtypeStruct((rows, lane), dtype),
        grid=grid,
        in_specs=[pl.BlockSpec((tile_rows, lane), lambda i: (i, 0))],
        out_specs=pl.BlockSpec((tile_rows, lane), lambda i: (i, 0)),
        compiler_params=pltpu.CompilerParams(
            dimension_semantics=("parallel",)  # shards rows across TCs (v7x)
        ),
        cost_estimate=cost,
    )(x2d)

    if padded:
        out_flat = out2d.reshape(-1)[:n]
        return out_flat.reshape(orig_shape)
    return out2d.reshape(orig_shape)


if __name__ == "__main__":
    key = jax.random.PRNGKey(0)
    # Example input consistent with typical conv feature maps: NCHW.
    x = jax.random.normal(key, (2, 4, 16, 16), dtype=jnp.float32)

    out = swish(x)
    out = jax.block_until_ready(out)

    # Reference check in plain JAX.
    ref = x * jax.nn.sigmoid(x)
    assert out.shape == x.shape and out.dtype == x.dtype
    assert jnp.allclose(out, ref, atol=1e-6, rtol=1e-6)

    print("KERNEL_OK")
</pallas_src>

<mosaic_0001>
module attributes {stable_mosaic.version = 11 : i64} {
  func.func @_swish_kernel(%arg0: i32, %arg1: memref<1x2048xf32, #tpu.memory_space<vmem>>, %arg2: memref<1x2048xf32, #tpu.memory_space<vmem>>) attributes {dimension_semantics = [#tpu.dimension_semantics<parallel>], iteration_bounds = array<i64: 1>, scalar_prefetch = 0 : i64, scratch_operands = 0 : i64, tpu.core_type = #tpu.core_type<tc>, window_params = [{transform_indices = @transform_0, window_bounds = array<i64: 1, 2048>}, {transform_indices = @transform_1, window_bounds = array<i64: 1, 2048>}]} {
    %c0 = arith.constant 0 : index
    %c0_0 = arith.constant 0 : index
    %0 = vector.load %arg1[%c0, %c0_0] : memref<1x2048xf32, #tpu.memory_space<vmem>>, vector<1x2048xf32>
    %cst = arith.constant 0.000000e+00 : f32
    %1 = vector.broadcast %cst : f32 to vector<1x2048xf32>
    %2 = arith.subf %1, %0 : vector<1x2048xf32>
    %3 = math.exp %2 : vector<1x2048xf32>
    %cst_1 = arith.constant 1.000000e+00 : f32
    %4 = vector.broadcast %cst_1 : f32 to vector<1x2048xf32>
    %5 = arith.addf %4, %3 : vector<1x2048xf32>
    %6 = tpu.reciprocal %5 : vector<1x2048xf32> -> vector<1x2048xf32>
    %7 = arith.mulf %0, %6 : vector<1x2048xf32>
    %c0_2 = arith.constant 0 : index
    %c0_3 = arith.constant 0 : index
    %8 = vector.load %arg2[%c0_2, %c0_3] : memref<1x2048xf32, #tpu.memory_space<vmem>>, vector<1x2048xf32>
    tpu.vector_store %arg2[%c0_2, %c0_3], %7 {strides = array<i32>} : memref<1x2048xf32, #tpu.memory_space<vmem>>, vector<1x2048xf32>,
    return
  }
  func.func @transform_0(%arg0: i32) -> (i32, i32) {
    %c0_i32 = arith.constant 0 : i32
    %c0_i32_0 = arith.constant 0 : i32
    return %arg0, %c0_i32 : i32, i32
  }
  func.func @transform_1(%arg0: i32) -> (i32, i32) {
    %c0_i32 = arith.constant 0 : i32
    %c0_i32_0 = arith.constant 0 : i32
    return %arg0, %c0_i32 : i32, i32
  }
}

</mosaic_0001>

<llo_original>
// kernel: tpu_custom_call.1
$region0: #{tpu_custom_call.1}
  #allocation0 [shape = 'u32[]', space=smem, size = 0x4, offset = 0x4, fixed_abs, tag = 'smem constant byte address 0x4 - core index']
  #allocation1 [shape = 'u32[72,128]{1,0:T(1,128)}', space=vmem, size = 0x9000, scoped, tag = 'internal scratch']
  %s0 = inlined_call_operand.hbm [shape: f32[1,2048], index: 0, kind: input, shape index: {}]
  %s1 = inlined_call_operand.hbm [shape: f32[1,2048], index: 1, kind: output, shape index: {}]
  %s2 = sld [smem:[#allocation0]]
  $region18: #{tpu_custom_call.1} parent=0
    _
  %s4 = ssub.s32 1, %s2
  %s5 = scalar_select 0, %s4, %s2
  $region1: #{tpu_custom_call.1} parent=0
    #allocation2 [shape = 'u8[8192]{0}', space=vmem, size = 0x2000, scoped, tag = 'input window, operand 0, single buffered']
    #allocation3 [shape = 's32[1]{0}', space=sflag, size = 0x4, scoped, tag = 'scoped memory for tpu_custom_call.1']
    #allocation4 [shape = 's32[1]{0}', space=sflag, size = 0x4, scoped, tag = 'scoped memory for tpu_custom_call.1']
    #allocation5 [shape = 'u8[8192]{0}', space=vmem, size = 0x2000, scoped, tag = 'output window, operand 0, single buffered']
    %6 = vsyncpa [#allocation3], 0
    %7 = vsyncpa [#allocation4], 0
    // Predicated region
    $region2: #{tpu_custom_call.1} parent=1 // pred_check
      _
    $region3: #{tpu_custom_call.1} parent=1 // pred_check_branch
      %9 = sbr.rel (0) target = $region5
    $region4: #{tpu_custom_call.1} parent=1 // pred_region
      %11 = vsyncadd [#allocation3], 0
      %s13 = sshll.u32 %s0, 4
      %s14 = int_to_ptr.hbm [resolvable:$true] %s13
      %s15 = sshll.u32 [#allocation2], 4
      %s16 = int_to_ptr.vmem [resolvable:$true] %s15
      %18 = dma.hbm_to_vmem [thread:$0]  %s14, 256, %s16, [#allocation3]
    $region5: #{tpu_custom_call.1} parent=1 // pred_fallthru
      _
    // Predicated region
    $region6: #{tpu_custom_call.1} parent=1 // pred_check
      _
    $region7: #{tpu_custom_call.1} parent=1 // pred_check_branch
      %20 = sbr.rel (0) target = $region9
    $region8: #{tpu_custom_call.1} parent=1 // pred_region
      %22 = dma.done [#allocation3], 256
    $region9: #{tpu_custom_call.1} parent=1 // pred_fallthru
      _
    %v23 = vld [vmem:[#allocation2] sm:$0xff]
    %v24 = vld [vmem:[#allocation2 + $0x8] sm:$0xff]
    %v25 = vsub.f32 0.0, %v23
    %v26 = vsub.f32 0.0, %v24
    %v27 = vmul.f32 %v25, 1.442695
    %v28 = vpow.pop %v27
    %v29 = vmul.f32 %v26, 1.442695
    %v30 = vpow.pop %v29
    %v31 = vadd.f32 %v28, 1.0
    %v32 = vadd.f32 %v30, 1.0
    %v33 = vrcp.pop %v31
    %v34 = vmul.f32 %v31, %v33
    %v35 = vsub.f32 1.0, %v34
    %v36 = vmul.f32 %v33, %v35
    %v37 = vadd.f32 %v33, %v36
    %vm38 = vweird.f32 %v31
    %vm39 = vweird.f32 %v33
    %vm40 = vmor %vm38, %vm39
    %v41 = vsel %vm40, %v33, %v37
    %v42 = vand.u32 2147483647, %v31
    %vm43 = vcmp.eq.f32.partialorder %v42, 8.507059e+37
    %v44 = vand.u32 %v31, 2147483648
    %v45 = vor.u32 1.1754944e-38, %v44
    %v46 = vsel %vm43, %v45, %v41
    %v47 = vrcp.pop %v32
    %v48 = vmul.f32 %v32, %v47
    %v49 = vsub.f32 1.0, %v48
    %v50 = vmul.f32 %v47, %v49
    %v51 = vadd.f32 %v47, %v50
    %vm52 = vweird.f32 %v32
    %vm53 = vweird.f32 %v47
    %vm54 = vmor %vm52, %vm53
    %v55 = vsel %vm54, %v47, %v51
    %v56 = vand.u32 2147483647, %v32
    %vm57 = vcmp.eq.f32.partialorder %v56, 8.507059e+37
    %v58 = vand.u32 %v32, 2147483648
    %v59 = vor.u32 1.1754944e-38, %v58
    %v60 = vsel %vm57, %v59, %v55
    %v61 = vmul.f32 %v23, %v46
    %v62 = vmul.f32 %v24, %v60
    %63 = vst [vmem:[#allocation5] sm:$0xff] %v61
    %64 = vst [vmem:[#allocation5 + $0x8] sm:$0xff] %v62
    // Predicated region
    $region10: #{tpu_custom_call.1} parent=1 // pred_check
      _
    $region11: #{tpu_custom_call.1} parent=1 // pred_check_branch
      %66 = sbr.rel (0) target = $region13
    $region12: #{tpu_custom_call.1} parent=1 // pred_region
      %68 = vsyncadd [#allocation4], 0
      %s70 = sshll.u32 [#allocation5], 4
      %s71 = int_to_ptr.vmem [resolvable:$true] %s70
      %s72 = sshll.u32 %s1, 4
      %s73 = int_to_ptr.hbm [resolvable:$true] %s72
      %75 = dma.vmem_to_hbm [thread:$0]  %s71, 256, %s73, [#allocation4]
    $region13: #{tpu_custom_call.1} parent=1 // pred_fallthru
      _
    // Predicated region
    $region14: #{tpu_custom_call.1} parent=1 // pred_check
      _
    $region15: #{tpu_custom_call.1} parent=1 // pred_check_branch
      %77 = sbr.rel (0) target = $region17
    $region16: #{tpu_custom_call.1} parent=1 // pred_region
      %79 = dma.done [#allocation4], 256
    $region17: #{tpu_custom_call.1} parent=1 // pred_fallthru
      _
    %80 = vsyncpa [#allocation3], 1
    %81 = vsyncpa [#allocation4], 1

</llo_original>
